<compile_context>
chip_gen: v7x
topology: tpu7x:2x2x1
jax: 0.10.0
libtpu: 0.0.40
codegen_flags: <defaults>
</compile_context>

<pallas_src>
import functools
import math

import numpy as np
import jax
import jax.numpy as jnp
from jax.experimental import pallas as pl
from jax.experimental.pallas import tpu as pltpu

EPS = 1e-5
_LANE = 128
_MAX_FOLD_WIDTH = 512          # cap on g*d so the fold matrix / MXU work stays small
_SUBLANE_MIN = {1: 32, 2: 16, 4: 8}


# ----------------------------- kernel bodies ------------------------------- #

def _ln_rows(x, w, b):
    """Per-row LayerNorm over the full block width. x is (R, W) float32."""
    inv_w = jnp.float32(1.0 / x.shape[-1])
    s = jnp.sum(x, axis=-1, keepdims=True)
    ss = jnp.sum(x * x, axis=-1, keepdims=True)          # one pass: sum & sumsq
    mean = s * inv_w
    var = jnp.maximum(ss * inv_w - mean * mean, 0.0)      # E[x^2] - mean^2, f32
    inv = jax.lax.rsqrt(var + EPS)
    y = (x - mean) * inv * w
    return y if b is None else y + b


def _ln_kernel(x_ref, w_ref, o_ref):
    o_ref[...] = _ln_rows(x_ref[...].astype(jnp.float32), w_ref[...], None
                          ).astype(o_ref.dtype)


def _ln_bias_kernel(x_ref, w_ref, b_ref, o_ref):
    o_ref[...] = _ln_rows(x_ref[...].astype(jnp.float32), w_ref[...], b_ref[...]
                          ).astype(o_ref.dtype)


def _ln_folded(x, a, w, b):
    """Folded small-D path: each 128-lane-multiple row packs g independent
    LayerNorm rows of d lanes.  `a` is the static (g*d, g*d) block-diagonal
    averaging matrix (1/d in each dxd diagonal block), so x @ a is the
    per-group mean broadcast to every lane of its group (MXU segment-sum),
    and (x*x) @ a is the broadcast E[x^2].  No masked loops, no XLU work."""
    mean_b = jnp.dot(x, a, preferred_element_type=jnp.float32)
    ex2_b = jnp.dot(x * x, a, preferred_element_type=jnp.float32)
    var_b = jnp.maximum(ex2_b - mean_b * mean_b, 0.0)
    inv_b = jax.lax.rsqrt(var_b + EPS)                     # EUP, own issue slot
    y = (x - mean_b) * inv_b * w
    return y if b is None else y + b


def _ln_folded_kernel(x_ref, a_ref, w_ref, o_ref):
    o_ref[...] = _ln_folded(x_ref[...].astype(jnp.float32), a_ref[...],
                            w_ref[...], None).astype(o_ref.dtype)


def _ln_folded_bias_kernel(x_ref, a_ref, w_ref, b_ref, o_ref):
    o_ref[...] = _ln_folded(x_ref[...].astype(jnp.float32), a_ref[...],
                            w_ref[...], b_ref[...]).astype(o_ref.dtype)


# ------------------------------ host helpers ------------------------------- #

@functools.lru_cache(maxsize=1)
def _vmem_limit_bytes():
    """Scoped-VMEM budget with headroom, sized per generation
    (v7x: 64 MiB/TensorCore -> 48 MiB; v5e/v6e: 128 MiB -> 96 MiB)."""
    phys = None
    try:
        phys = pltpu.get_tpu_info().vmem_capacity_bytes
    except Exception:
        phys = None
    if not phys:
        try:
            kind = jax.devices()[0].device_kind.lower()
        except Exception:
            kind = ""
        phys = (64 << 20) if ("v7" in kind or "7x" in kind) else (128 << 20)
    return int(min(phys * 3 // 4, 96 << 20))


def _pick_tile_rows(n_rows, width, itemsize, vmem_limit, extra_bytes=0):
    """Row tile sized in bytes from the VMEM budget (no fixed row cap):
    double-buffered in+out blocks plus ~20 B/elem of f32 temporaries must fit
    in ~75% of the scoped limit.  Prefer >=4 grid steps (pipeline overlap and
    2-TensorCore sharding of the parallel axis on v7x) as long as each input
    block stays >= ~2 MiB so the ~0.35 us fixed per-step overhead is hidden."""
    row_bytes = width * itemsize
    per_row = 4 * row_bytes + 20 * width          # 2x(in+out) buffers + f32 temps
    budget = max(vmem_limit * 3 // 4 - extra_bytes, per_row)
    t = max(budget // per_row, 1)

    min_block_rows = max((2 << 20) // row_bytes, 256)
    quarter = pl.cdiv(n_rows, 4)
    if quarter >= min_block_rows:
        t = min(t, quarter)

    if t >= n_rows:
        return n_rows                              # full-extent block is always legal
    sub_min = _SUBLANE_MIN.get(itemsize, 8)
    align = 32 if t >= 32 else sub_min
    return max((t // align) * align, sub_min)


def _fold_matrix(d, g):
    """Static (g*d, g*d) block-diagonal averaging matrix (1/d per block)."""
    gd = g * d
    a = np.zeros((gd, gd), np.float32)
    for k in range(g):
        a[k * d:(k + 1) * d, k * d:(k + 1) * d] = np.float32(1.0 / d)
    return jnp.asarray(a)


def _run(x2, w2, b2, a2, kernel, *, tile_rows=None, trans_per_row=1):
    rows, width = x2.shape
    itemsize = jnp.dtype(x2.dtype).itemsize
    vmem_limit = _vmem_limit_bytes()
    extra = 0 if a2 is None else 2 * int(a2.size) * 4
    if tile_rows is None:
        tile_rows = _pick_tile_rows(rows, width, itemsize, vmem_limit, extra)
    tile_rows = min(int(tile_rows), rows)
    grid = pl.cdiv(rows, tile_rows)

    in_arrays = [x2]
    in_specs = [pl.BlockSpec((tile_rows, width), lambda i: (i, 0))]
    if a2 is not None:
        in_arrays.append(a2)
        in_specs.append(pl.BlockSpec(a2.shape, lambda i: (0, 0)))
    in_arrays.append(w2)
    in_specs.append(pl.BlockSpec((1, width), lambda i: (0, 0)))
    if b2 is not None:
        in_arrays.append(b2)
        in_specs.append(pl.BlockSpec((1, width), lambda i: (0, 0)))

    mm_flops = 0 if a2 is None else 4 * rows * width * width
    return pl.pallas_call(
        kernel,
        out_shape=jax.ShapeDtypeStruct((rows, width), x2.dtype),
        grid_spec=pltpu.PrefetchScalarGridSpec(
            num_scalar_prefetch=0,
            grid=(grid,),
            in_specs=in_specs,
            out_specs=pl.BlockSpec((tile_rows, width), lambda i: (i, 0)),
        ),
        compiler_params=pltpu.CompilerParams(
            # Rows are independent: the single grid axis is "parallel" so it
            # shards across both TensorCores on v7x megacore.
            dimension_semantics=("parallel",),
            vmem_limit_bytes=vmem_limit,
        ),
        cost_estimate=pl.CostEstimate(
            flops=9 * rows * width + mm_flops,
            transcendentals=rows * trans_per_row,
            bytes_accessed=2 * rows * width * itemsize + 4 * width
            + (0 if a2 is None else int(a2.size) * 4),
        ),
    )(*in_arrays)


@functools.partial(jax.jit, static_argnames=("tile_rows",))
def layer_norm(x, weight, bias=None, *, tile_rows=None):
    """LayerNorm over the last dim, matching F.layer_norm(x, (D,), w, b, 1e-5)."""
    orig_shape = x.shape
    d = orig_shape[-1]
    x2 = x.reshape(-1, d)
    n = x2.shape[0]

    # Hoist the f32 cast of the (tiny) parameters out of the kernel.
    w_f32 = weight.astype(jnp.float32)
    b_f32 = None if bias is None else bias.astype(jnp.float32)

    # Lane-dense fold: when d is not a multiple of 128, pack g = 128/gcd(128,d)
    # consecutive rows into one folded row of g*d lanes (d=32 -> g=4, d=96 -> g=4,
    # d=192 -> g=2) so HBM DMA and vector stores stay full-width.
    g = 1
    if d % _LANE != 0:
        g0 = _LANE // math.gcd(_LANE, d)
        if g0 > 1 and g0 * d <= _MAX_FOLD_WIDTH and n % g0 == 0:
            g = g0
    # If n % g != 0 we fall back to the (lane-masked) standard path: splitting a
    # <g-row remainder into a second call would force a full-output concat/copy.

    if g > 1:
        width = g * d
        x_in = x2.reshape(n // g, width)                  # contiguous -> free reshape
        w_in = jnp.tile(w_f32, g).reshape(1, width)
        b_in = None if b_f32 is None else jnp.tile(b_f32, g).reshape(1, width)
        a_in = _fold_matrix(d, g)
        kernel = _ln_folded_bias_kernel if b_in is not None else _ln_folded_kernel
        out = _run(x_in, w_in, b_in, a_in, kernel, tile_rows=tile_rows,
                   trans_per_row=width)
    else:
        w_in = w_f32.reshape(1, d)
        b_in = None if b_f32 is None else b_f32.reshape(1, d)
        kernel = _ln_bias_kernel if b_in is not None else _ln_kernel
        out = _run(x2, w_in, b_in, None, kernel, tile_rows=tile_rows,
                   trans_per_row=1)

    return out.reshape(orig_shape)


def _reference_layer_norm(x, w, b):
    mean = jnp.mean(x, axis=-1, keepdims=True)
    var = jnp.mean((x - mean) ** 2, axis=-1, keepdims=True)
    return (x - mean) * jax.lax.rsqrt(var + EPS) * w + b


if __name__ == "__main__":
    # Shapes implied by the module: transformer activations (B, T, D).
    B, T, D = 2, 16, 32
    kx, kw, kb = jax.random.split(jax.random.PRNGKey(0), 3)
    x = jax.random.normal(kx, (B, T, D), dtype=jnp.float32)
    # Module init is weight=ones, bias=zeros; perturb slightly so the check also
    # catches scale/shift (and lane-fold / segment-sum) bugs.
    weight = 1.0 + 0.1 * jax.random.normal(kw, (D,), dtype=jnp.float32)
    bias = 0.1 * jax.random.normal(kb, (D,), dtype=jnp.float32)

    # 1) Small-D folded (MXU segment-sum) path with bias.
    y = jax.block_until_ready(layer_norm(x, weight, bias))
    ref = _reference_layer_norm(x, weight, bias)
    assert jnp.allclose(y, ref, atol=1e-4, rtol=1e-4), "mismatch (D=32 folded)"

    # 2) Wide, already lane-dense path with bias=None (specialized kernel).
    D2 = 128
    x2 = jax.random.normal(kx, (B, T, D2), dtype=jnp.float32)
    w2 = 1.0 + 0.1 * jax.random.normal(kw, (D2,), dtype=jnp.float32)
    y2 = jax.block_until_ready(layer_norm(x2, w2))
    ref2 = _reference_layer_norm(x2, w2, 0.0)
    assert jnp.allclose(y2, ref2, atol=1e-4, rtol=1e-4), "mismatch (D=128 no-bias)"

    # 3) Ragged last grid block: 14 rows with a forced 8-row tile exercises the
    #    masked out-of-bounds block (rows are independent; garbage rows are
    #    discarded on the masked store).
    x3 = jax.random.normal(kb, (14, D2), dtype=jnp.float32)
    y3 = jax.block_until_ready(layer_norm(x3, w2, bias=None, tile_rows=8))
    ref3 = _reference_layer_norm(x3, w2, 0.0)
    assert jnp.allclose(y3, ref3, atol=1e-4, rtol=1e-4), "mismatch (ragged rows)"

    print("KERNEL_OK")
</pallas_src>

<mosaic_0001>
module attributes {stable_mosaic.version = 11 : i64} {
  func.func @_ln_folded_bias_kernel(%arg0: i32, %arg1: memref<8x128xf32, #tpu.memory_space<vmem>>, %arg2: memref<128x128xf32, #tpu.memory_space<vmem>>, %arg3: memref<1x128xf32, #tpu.memory_space<vmem>>, %arg4: memref<1x128xf32, #tpu.memory_space<vmem>>, %arg5: memref<8x128xf32, #tpu.memory_space<vmem>>) attributes {dimension_semantics = [#tpu.dimension_semantics<parallel>], iteration_bounds = array<i64: 1>, scalar_prefetch = 0 : i64, scratch_operands = 0 : i64, tpu.core_type = #tpu.core_type<tc>, window_params = [{transform_indices = @transform_0, window_bounds = array<i64: 8, 128>}, {pipeline_mode = #tpu.pipeline_mode<synchronous>, transform_indices = @transform_1, window_bounds = array<i64: 128, 128>}, {pipeline_mode = #tpu.pipeline_mode<synchronous>, transform_indices = @transform_2, window_bounds = array<i64: 1, 128>}, {pipeline_mode = #tpu.pipeline_mode<synchronous>, transform_indices = @transform_3, window_bounds = array<i64: 1, 128>}, {transform_indices = @transform_4, window_bounds = array<i64: 8, 128>}]} {
    %c0 = arith.constant 0 : index
    %c0_0 = arith.constant 0 : index
    %0 = vector.load %arg1[%c0, %c0_0] : memref<8x128xf32, #tpu.memory_space<vmem>>, vector<8x128xf32>
    %c0_1 = arith.constant 0 : index
    %c0_2 = arith.constant 0 : index
    %1 = vector.load %arg2[%c0_1, %c0_2] : memref<128x128xf32, #tpu.memory_space<vmem>>, vector<128x128xf32>
    %c0_3 = arith.constant 0 : index
    %c0_4 = arith.constant 0 : index
    %2 = vector.load %arg3[%c0_3, %c0_4] : memref<1x128xf32, #tpu.memory_space<vmem>>, vector<1x128xf32>
    %c0_5 = arith.constant 0 : index
    %c0_6 = arith.constant 0 : index
    %3 = vector.load %arg4[%c0_5, %c0_6] : memref<1x128xf32, #tpu.memory_space<vmem>>, vector<1x128xf32>
    %cst = arith.constant dense<0.000000e+00> : vector<8x128xf32>
    %4 = tpu.matmul %0, %1, %cst {dimension_numbers = #tpu.dot_dimension_numbers<[1], [0], [0], [1], [0, 0, 1, 1], [], []>} : vector<8x128xf32>, vector<128x128xf32>, vector<8x128xf32> -> vector<8x128xf32>
    %5 = arith.mulf %0, %0 : vector<8x128xf32>
    %cst_7 = arith.constant dense<0.000000e+00> : vector<8x128xf32>
    %6 = tpu.matmul %5, %1, %cst_7 {dimension_numbers = #tpu.dot_dimension_numbers<[1], [0], [0], [1], [0, 0, 1, 1], [], []>} : vector<8x128xf32>, vector<128x128xf32>, vector<8x128xf32> -> vector<8x128xf32>
    %7 = arith.mulf %4, %4 : vector<8x128xf32>
    %8 = arith.subf %6, %7 : vector<8x128xf32>
    %cst_8 = arith.constant 0.000000e+00 : f32
    %9 = vector.broadcast %cst_8 : f32 to vector<8x128xf32>
    %10 = arith.maximumf %8, %9 : vector<8x128xf32>
    %cst_9 = arith.constant 9.99999974E-6 : f32
    %11 = vector.broadcast %cst_9 : f32 to vector<8x128xf32>
    %12 = arith.addf %10, %11 : vector<8x128xf32>
    %13 = math.rsqrt %12 : vector<8x128xf32>
    %14 = arith.subf %0, %4 : vector<8x128xf32>
    %15 = arith.mulf %14, %13 : vector<8x128xf32>
    %16 = vector.broadcast %2 : vector<1x128xf32> to vector<8x128xf32>
    %17 = arith.mulf %15, %16 : vector<8x128xf32>
    %18 = vector.broadcast %3 : vector<1x128xf32> to vector<8x128xf32>
    %19 = arith.addf %17, %18 : vector<8x128xf32>
    %c0_10 = arith.constant 0 : index
    %c0_11 = arith.constant 0 : index
    %20 = vector.load %arg5[%c0_10, %c0_11] : memref<8x128xf32, #tpu.memory_space<vmem>>, vector<8x128xf32>
    tpu.vector_store %arg5[%c0_10, %c0_11], %19 {strides = array<i32>} : memref<8x128xf32, #tpu.memory_space<vmem>>, vector<8x128xf32>,
    return
  }
  func.func @transform_0(%arg0: i32) -> (i32, i32) {
    %c0_i32 = arith.constant 0 : i32
    %c0_i32_0 = arith.constant 0 : i32
    return %arg0, %c0_i32 : i32, i32
  }
  func.func @transform_1(%arg0: i32) -> (i32, i32) {
    %c0_i32 = arith.constant 0 : i32
    %c0_i32_0 = arith.constant 0 : i32
    %c0_i32_1 = arith.constant 0 : i32
    return %c0_i32, %c0_i32_0 : i32, i32
  }
  func.func @transform_2(%arg0: i32) -> (i32, i32) {
    %c0_i32 = arith.constant 0 : i32
    %c0_i32_0 = arith.constant 0 : i32
    %c0_i32_1 = arith.constant 0 : i32
    return %c0_i32, %c0_i32_0 : i32, i32
  }
  func.func @transform_3(%arg0: i32) -> (i32, i32) {
    %c0_i32 = arith.constant 0 : i32
    %c0_i32_0 = arith.constant 0 : i32
    %c0_i32_1 = arith.constant 0 : i32
    return %c0_i32, %c0_i32_0 : i32, i32
  }
  func.func @transform_4(%arg0: i32) -> (i32, i32) {
    %c0_i32 = arith.constant 0 : i32
    %c0_i32_0 = arith.constant 0 : i32
    return %arg0, %c0_i32 : i32, i32
  }
}

</mosaic_0001>

<llo_original>
// kernel: tile.13
$region0: #{tile.13}
  #allocation0 [shape = 's32[1]{0}', space=sflag, size = 0x4, scoped, tag = 'scoped memory for tile.13']
  %s0 = inlined_call_operand.vmem [shape: f32[32], index: 0, kind: input, shape index: {}]
  %s1 = inlined_call_operand.vmem [shape: f32[4,32], index: 1, kind: output, shape index: {}]
  // Predicated region
  $region2: #{tile.13} parent=0 // pred_check
    _
  $region3: #{tile.13} parent=0 // pred_check_branch
    %3 = sbr.rel (0) target = $region5
  $region4: #{tile.13} parent=0 // pred_region
    _
  $region5: #{tile.13} parent=0 // pred_fallthru
    _
  %v4 = vld [vmem:[%s0] ss:$0 sm:$0xff]
  %5 = vst [vmem:[%s1] sm:$0xf] %v4

// kernel: tile.14
$region0: #{tile.14}
  %s0 = inlined_call_operand.vmem [shape: f32[4,32], index: 0, kind: input, shape index: {}]
  %s1 = inlined_call_operand.hbm [shape: f32[1,128], index: 1, kind: output, shape index: {}]
  $region1: #{tile.14} parent=0
    #allocation0 [shape = 'u8[512]{0}', space=vmem, size = 0x400, scoped, tag = 'operand span for operand 1']
    #allocation1 [shape = 's32[1]{0}', space=sflag, size = 0x4, scoped, tag = 'scoped memory for tile.14']
    #allocation2 [shape = 'u8[4096]{0}', space=vmem, size = 0x1000, scoped, tag = 'scoped mem for output reshape']
    #allocation3 [shape = 'u8[4096]{0}', space=vmem, size = 0x1000, scoped, tag = 'scoped mem for input reshape']
    %2 = vsyncpa [#allocation1], 0
    %s4 = sshllo.u32 0, 4
    %v5 = vld [vmem:[%s0] sm:%s4]
    %6 = vst [vmem:[#allocation3] sm:%s4] %v5
    %v7 = vld [vmem:[#allocation3] sm:$0x1]
    %vm8 = vcmask 261120
    %9 = vst.msk [vmem:[#allocation2] sm:$0x1] %vm8, %v7
    %s10 = scalar_lea.vmem [#allocation3], 3
    %v11 = vld [vmem:[%s10] sm:$0x1]
    %12 = vrot.lane.b32.xlu0 %v11, 96
    %v13 = vpop.permute.xlu0 %12
    %vm14 = vcmask 1048320
    %15 = vst.msk [vmem:[#allocation2] sm:$0x1] %vm14, %v13
    %s16 = scalar_lea.vmem [#allocation3], 2
    %v17 = vld [vmem:[%s16] sm:$0x1]
    %18 = vrot.lane.b32.xlu0 %v17, 64
    %v19 = vpop.permute.xlu0 %18
    %vm20 = vcmask 785920
    %21 = vst.msk [vmem:[#allocation2] sm:$0x1] %vm20, %v19
    %s22 = scalar_lea.vmem [#allocation3], 1
    %v23 = vld [vmem:[%s22] sm:$0x1]
    %24 = vrot.lane.b32.xlu0 %v23, 32
    %v25 = vpop.permute.xlu0 %24
    %vm26 = vcmask 523520
    %27 = vst.msk [vmem:[#allocation2] sm:$0x1] %vm26, %v25
    %s29 = sshllo.u32 0, 1
    %v31 = vld [vmem:[#allocation2] sm:%s29]
    %s32 = sshllo.u32 0, 1
    %33 = vst [vmem:[#allocation0] sm:%s32] %v31
    %s35 = ssub.s32 16, 16
    %36 = vsyncadd [#allocation1], %s35
    %s38 = sshll.u32 [#allocation0], 4
    %s39 = int_to_ptr.vmem [resolvable:$true] %s38
    %41 = dma.vmem_to_hbm [thread:$0]  %s39, 16, %s1, [#allocation1]
    %42 = dma.done [#allocation1], 16
    %43 = vsyncpa [#allocation1], 1

// kernel: layer_norm.1
$region0: #{layer_norm.1}
  #allocation0 [shape = 'u32[]', space=smem, size = 0x4, offset = 0x4, fixed_abs, tag = 'smem constant byte address 0x4 - core index']
  #allocation1 [shape = 'u32[144,128]{1,0:T(1,128)}', space=vmem, size = 0x12000, scoped, tag = 'internal scratch']
  %s0 = inlined_call_operand.hbm [shape: f32[8,128], index: 0, kind: input, shape index: {}]
  %s1 = inlined_call_operand.hbm [shape: f32[128,128], index: 1, kind: input, shape index: {}]
  %s2 = inlined_call_operand.hbm [shape: f32[1,128], index: 2, kind: input, shape index: {}]
  %s3 = inlined_call_operand.hbm [shape: f32[1,128], index: 3, kind: input, shape index: {}]
  %s4 = inlined_call_operand.hbm [shape: f32[8,128], index: 4, kind: output, shape index: {}]
  %s5 = sld [smem:[#allocation0]]
  $region42: #{layer_norm.1} parent=0
    _
  %s7 = ssub.s32 1, %s5
  %s8 = scalar_select 0, %s7, %s5
  $region1: #{layer_norm.1} parent=0
    #allocation2 [shape = 'u8[4096]{0}', space=vmem, size = 0x1000, scoped, tag = 'input window, operand 0, single buffered']
    #allocation3 [shape = 's32[1]{0}', space=sflag, size = 0x4, scoped, tag = 'scoped memory for layer_norm.1']
    #allocation4 [shape = 's32[1]{0}', space=sflag, size = 0x4, scoped, tag = 'scoped memory for layer_norm.1']
    #allocation5 [shape = 'u8[65536]{0}', space=vmem, size = 0x10000, scoped, tag = 'input window, operand 1, single buffered']
    #allocation6 [shape = 's32[1]{0}', space=sflag, size = 0x4, scoped, tag = 'scoped memory for layer_norm.1']
    #allocation7 [shape = 'u8[512]{0}', space=vmem, size = 0x400, scoped, tag = 'input window, operand 2, single buffered']
    #allocation8 [shape = 'u8[512]{0}', space=vmem, size = 0x400, scoped, tag = 'input window, operand 3, single buffered']
    #allocation9 [shape = 's32[1]{0}', space=sflag, size = 0x4, scoped, tag = 'scoped memory for layer_norm.1']
    #allocation10 [shape = 'u8[4096]{0}', space=vmem, size = 0x1000, scoped, tag = 'output window, operand 0, single buffered']
    %9 = vsyncpa [#allocation3], 0
    %10 = vsyncpa [#allocation6], 0
    %11 = vsyncpa [#allocation9], 0
    %12 = vsyncpa [#allocation4], 0
    // Predicated region
    $region2: #{layer_norm.1} parent=1 // pred_check
      _
    $region3: #{layer_norm.1} parent=1 // pred_check_branch
      %14 = sbr.rel (0) target = $region5
    $region4: #{layer_norm.1} parent=1 // pred_region
      %s16 = ssub.s32 128, 128
      %17 = vsyncadd [#allocation3], %s16
      %s19 = sshll.u32 [#allocation2], 4
      %s20 = int_to_ptr.vmem [resolvable:$true] %s19
      %22 = dma.hbm_to_vmem [thread:$0]  %s0, 128, %s20, [#allocation3]
    $region5: #{layer_norm.1} parent=1 // pred_fallthru
      _
    // Predicated region
    $region6: #{layer_norm.1} parent=1 // pred_check
      _
    $region7: #{layer_norm.1} parent=1 // pred_check_branch
      %24 = sbr.rel (0) target = $region9
    $region8: #{layer_norm.1} parent=1 // pred_region
      %s26 = ssub.s32 2048, 2048
      %27 = vsyncadd [#allocation6], %s26
      %s28 = sshll.u32 [#allocation5], 4
      %s29 = int_to_ptr.vmem [resolvable:$true] %s28
      %34 = dma.hbm_to_vmem [thread:$0]  %s1, 2048, %s29, [#allocation6], 128, 128, 8
    $region9: #{layer_norm.1} parent=1 // pred_fallthru
      _
    // Predicated region
    $region10: #{layer_norm.1} parent=1 // pred_check
      _
    $region11: #{layer_norm.1} parent=1 // pred_check_branch
      %36 = sbr.rel (0) target = $region13
    $region12: #{layer_norm.1} parent=1 // pred_region
      %s38 = ssub.s32 16, 16
      %39 = vsyncadd [#allocation6], %s38
      %s41 = sshll.u32 [#allocation7], 4
      %s42 = int_to_ptr.vmem [resolvable:$true] %s41
      %44 = dma.hbm_to_vmem [thread:$0]  %s2, 16, %s42, [#allocation6]
    $region13: #{layer_norm.1} parent=1 // pred_fallthru
      _
    // Predicated region
    $region14: #{layer_norm.1} parent=1 // pred_check
      _
    $region15: #{layer_norm.1} parent=1 // pred_check_branch
      %46 = sbr.rel (0) target = $region17
    $region16: #{layer_norm.1} parent=1 // pred_region
      %s48 = ssub.s32 16, 16
      %49 = vsyncadd [#allocation9], %s48
      %s51 = sshll.u32 [#allocation8], 4
      %s52 = int_to_ptr.vmem [resolvable:$true] %s51
      %54 = dma.hbm_to_vmem [thread:$0]  %s3, 16, %s52, [#allocation9]
    $region17: #{layer_norm.1} parent=1 // pred_fallthru
      _
    // Predicated region
    $region18: #{layer_norm.1} parent=1 // pred_check
      _
    $region19: #{layer_norm.1} parent=1 // pred_check_branch
      %56 = sbr.rel (0) target = $region21
    $region20: #{layer_norm.1} parent=1 // pred_region
      %57 = dma.done [#allocation3], 128
    $region21: #{layer_norm.1} parent=1 // pred_fallthru
      _
    // Predicated region
    $region22: #{layer_norm.1} parent=1 // pred_check
      _
    $region23: #{layer_norm.1} parent=1 // pred_check_branch
      %59 = sbr.rel (0) target = $region25
    $region24: #{layer_norm.1} parent=1 // pred_region
      %60 = dma.done [#allocation6], 2048
    $region25: #{layer_norm.1} parent=1 // pred_fallthru
      _
    // Predicated region
    $region26: #{layer_norm.1} parent=1 // pred_check
      _
    $region27: #{layer_norm.1} parent=1 // pred_check_branch
      %62 = sbr.rel (0) target = $region29
    $region28: #{layer_norm.1} parent=1 // pred_region
      %63 = dma.done [#allocation6], 16
    $region29: #{layer_norm.1} parent=1 // pred_fallthru
      _
    // Predicated region
    $region30: #{layer_norm.1} parent=1 // pred_check
      _
    $region31: #{layer_norm.1} parent=1 // pred_check_branch
      %65 = sbr.rel (0) target = $region33
    $region32: #{layer_norm.1} parent=1 // pred_region
      %66 = dma.done [#allocation9], 16
    $region33: #{layer_norm.1} parent=1 // pred_fallthru
      _
    %v67 = vld [vmem:[#allocation2] sm:$0xff]
    %v68 = vld [vmem:[#allocation5] sm:$0xff]
    %v69 = vld [vmem:[#allocation5 + $0x8] sm:$0xff]
    %v70 = vld [vmem:[#allocation5 + $0x10] sm:$0xff]
    %v71 = vld [vmem:[#allocation5 + $0x18] sm:$0xff]
    %v72 = vld [vmem:[#allocation5 + $0x20] sm:$0xff]
    %v73 = vld [vmem:[#allocation5 + $0x28] sm:$0xff]
    %v74 = vld [vmem:[#allocation5 + $0x30] sm:$0xff]
    %v75 = vld [vmem:[#allocation5 + $0x38] sm:$0xff]
    %v76 = vld [vmem:[#allocation5 + $0x40] sm:$0xff]
    %v77 = vld [vmem:[#allocation5 + $0x48] sm:$0xff]
    %v78 = vld [vmem:[#allocation5 + $0x50] sm:$0xff]
    %v79 = vld [vmem:[#allocation5 + $0x58] sm:$0xff]
    %v80 = vld [vmem:[#allocation5 + $0x60] sm:$0xff]
    %v81 = vld [vmem:[#allocation5 + $0x68] sm:$0xff]
    %v82 = vld [vmem:[#allocation5 + $0x70] sm:$0xff]
    %v83 = vld [vmem:[#allocation5 + $0x78] sm:$0xff]
    %v84 = vld [vmem:[#allocation7] sm:$0x1]
    %v85 = vld [vmem:[#allocation8] sm:$0x1]
    %86 = vmatprep.subr.mxu0 0.0
    %87 = vmatpush1.msra.mxu0 %v68
    %88 = vmatprep.subr.mxu0 0.0
    %89 = vmatpush1.msra.mxu0 %v69
    %90 = vmatprep.subr.mxu0 0.0
    %91 = vmatpush1.msra.mxu0 %v70
    %92 = vmatprep.subr.mxu0 0.0
    %93 = vmatpush1.msra.mxu0 %v71
    %94 = vmatprep.subr.mxu0 0.0
    %95 = vmatpush1.msra.mxu0 %v72
    %96 = vmatprep.subr.mxu0 0.0
    %97 = vmatpush1.msra.mxu0 %v73
    %98 = vmatprep.subr.mxu0 0.0
    %99 = vmatpush1.msra.mxu0 %v74
    %100 = vmatprep.subr.mxu0 0.0
    %101 = vmatpush1.msra.mxu0 %v75
    %102 = vmatprep.subr.mxu0 0.0
    %103 = vmatpush1.msra.mxu0 %v76
    %104 = vmatprep.subr.mxu0 0.0
    %105 = vmatpush1.msra.mxu0 %v77
    %106 = vmatprep.subr.mxu0 0.0
    %107 = vmatpush1.msra.mxu0 %v78
    %108 = vmatprep.subr.mxu0 0.0
    %109 = vmatpush1.msra.mxu0 %v79
    %110 = vmatprep.subr.mxu0 0.0
    %111 = vmatpush1.msra.mxu0 %v80
    %112 = vmatprep.subr.mxu0 0.0
    %113 = vmatpush1.msra.mxu0 %v81
    %114 = vmatprep.subr.mxu0 0.0
    %115 = vmatpush1.msra.mxu0 %v82
    %116 = vmatprep.subr.mxu0 0.0
    %117 = vmatpush1.msra.mxu0 %v83
    %118 = vmatprep.subr.mxu0 0.0
    %119 = vmatpush1.msra.mxu0 0.0
    %120 = vmatprep.subr.mxu0 0.0
    %121 = vmatpush1.msra.mxu0 0.0
    %122 = vmatprep.subr.mxu0 0.0
    %123 = vmatpush1.msra.mxu0 0.0
    %124 = vmatprep.subr.mxu0 0.0
    %125 = vmatpush1.msra.mxu0 0.0
    %126 = vmatprep.subr.mxu0 0.0
    %127 = vmatpush1.msra.mxu0 0.0
    %128 = vmatprep.subr.mxu0 0.0
    %129 = vmatpush1.msra.mxu0 0.0
    %130 = vmatprep.subr.mxu0 0.0
    %131 = vmatpush1.msra.mxu0 0.0
    %132 = vmatprep.subr.mxu0 0.0
    %133 = vmatpush1.msra.mxu0 0.0
    %134 = vmatprep.subr.mxu0 0.0
    %135 = vmatpush1.msra.mxu0 0.0
    %136 = vmatprep.subr.mxu0 0.0
    %137 = vmatpush1.msra.mxu0 0.0
    %138 = vmatprep.subr.mxu0 0.0
    %139 = vmatpush1.msra.mxu0 0.0
    %140 = vmatprep.subr.mxu0 0.0
    %141 = vmatpush1.msra.mxu0 0.0
    %142 = vmatprep.subr.mxu0 0.0
    %143 = vmatpush1.msra.mxu0 0.0
    %144 = vmatprep.subr.mxu0 0.0
    %145 = vmatpush1.msra.mxu0 0.0
    %146 = vmatprep.subr.mxu0 0.0
    %147 = vmatpush1.msra.mxu0 0.0
    %148 = vmatprep.subr.mxu0 0.0
    %149 = vmatpush1.msra.mxu0 0.0
    %150 = vmatprep.mubr.f32.mxu0 0.0
    %151 = vmatmul.mubr.f32.gmra.mrb[0].mxu0 %v67
    %v152 = vpop.f32.mrb[0].mxu0
    %v153 = vadd.f32 0.0, %v152
    %v154 = vpop.f32.mrb[0].mxu0
    %155 = vdwg.mxu0
    %v156 = vmul.f32 %v67, %v67
    %157 = vmatprep.subr.mxu0 0.0
    %158 = vmatpush1.msra.mxu0 %v68
    %159 = vmatprep.subr.mxu0 0.0
    %160 = vmatpush1.msra.mxu0 %v69
    %161 = vmatprep.subr.mxu0 0.0
    %162 = vmatpush1.msra.mxu0 %v70
    %163 = vmatprep.subr.mxu0 0.0
    %164 = vmatpush1.msra.mxu0 %v71
    %165 = vmatprep.subr.mxu0 0.0
    %166 = vmatpush1.msra.mxu0 %v72
    %167 = vmatprep.subr.mxu0 0.0
    %168 = vmatpush1.msra.mxu0 %v73
    %169 = vmatprep.subr.mxu0 0.0
    %170 = vmatpush1.msra.mxu0 %v74
    %171 = vmatprep.subr.mxu0 0.0
    %172 = vmatpush1.msra.mxu0 %v75
    %173 = vmatprep.subr.mxu0 0.0
    %174 = vmatpush1.msra.mxu0 %v76
    %175 = vmatprep.subr.mxu0 0.0
    %176 = vmatpush1.msra.mxu0 %v77
    %177 = vmatprep.subr.mxu0 0.0
    %178 = vmatpush1.msra.mxu0 %v78
    %179 = vmatprep.subr.mxu0 0.0
    %180 = vmatpush1.msra.mxu0 %v79
    %181 = vmatprep.subr.mxu0 0.0
    %182 = vmatpush1.msra.mxu0 %v80
    %183 = vmatprep.subr.mxu0 0.0
    %184 = vmatpush1.msra.mxu0 %v81
    %185 = vmatprep.subr.mxu0 0.0
    %186 = vmatpush1.msra.mxu0 %v82
    %187 = vmatprep.subr.mxu0 0.0
    %188 = vmatpush1.msra.mxu0 %v83
    %189 = vmatprep.subr.mxu0 0.0
    %190 = vmatpush1.msra.mxu0 0.0
    %191 = vmatprep.subr.mxu0 0.0
    %192 = vmatpush1.msra.mxu0 0.0
    %193 = vmatprep.subr.mxu0 0.0
    %194 = vmatpush1.msra.mxu0 0.0
    %195 = vmatprep.subr.mxu0 0.0
    %196 = vmatpush1.msra.mxu0 0.0
    %197 = vmatprep.subr.mxu0 0.0
    %198 = vmatpush1.msra.mxu0 0.0
    %199 = vmatprep.subr.mxu0 0.0
    %200 = vmatpush1.msra.mxu0 0.0
    %201 = vmatprep.subr.mxu0 0.0
    %202 = vmatpush1.msra.mxu0 0.0
    %203 = vmatprep.subr.mxu0 0.0
    %204 = vmatpush1.msra.mxu0 0.0
    %205 = vmatprep.subr.mxu0 0.0
    %206 = vmatpush1.msra.mxu0 0.0
    %207 = vmatprep.subr.mxu0 0.0
    %208 = vmatpush1.msra.mxu0 0.0
    %209 = vmatprep.subr.mxu0 0.0
    %210 = vmatpush1.msra.mxu0 0.0
    %211 = vmatprep.subr.mxu0 0.0
    %212 = vmatpush1.msra.mxu0 0.0
    %213 = vmatprep.subr.mxu0 0.0
    %214 = vmatpush1.msra.mxu0 0.0
    %215 = vmatprep.subr.mxu0 0.0
    %216 = vmatpush1.msra.mxu0 0.0
    %217 = vmatprep.subr.mxu0 0.0
    %218 = vmatpush1.msra.mxu0 0.0
    %219 = vmatprep.subr.mxu0 0.0
    %220 = vmatpush1.msra.mxu0 0.0
    %221 = vmatprep.mubr.f32.mxu0 0.0
    %222 = vmatmul.mubr.f32.gmra.mrb[0].mxu0 %v156
    %v223 = vpop.f32.mrb[0].mxu0
    %v224 = vadd.f32 0.0, %v223
    %v225 = vpop.f32.mrb[0].mxu0
    %226 = vdwg.mxu0
    %v227 = vmul.f32 %v153, %v153
    %v228 = vsub.f32 %v224, %v227
    %v229 = vmax.f32 %v228, 0.0
    %v230 = vadd.f32 %v229, 1e-05
    %v231 = vrsqrt.pop %v230
    %v232 = vsub.f32 %v67, %v153
    %v233 = vmul.f32 %v232, %v231
    %v235 = vlaneseq
    %v236 = vshrl.u32 %v235, 7
    %v237 = vsub.s32 0, %v236
    %v238 = vrot.slane %v84, %v237
    %v240 = vmul.f32 %v233, %v238
    %v242 = vlaneseq
    %v243 = vshrl.u32 %v242, 7
    %v244 = vsub.s32 0, %v243
    %v245 = vrot.slane %v85, %v244
    %v247 = vadd.f32 %v240, %v245
    %248 = vst [vmem:[#allocation10] sm:$0xff] %v247
    // Predicated region
    $region34: #{layer_norm.1} parent=1 // pred_check
      _
    $region35: #{layer_norm.1} parent=1 // pred_check_branch
      %250 = sbr.rel (0) target = $region37
    $region36: #{layer_norm.1} parent=1 // pred_region
      %s252 = ssub.s32 128, 128
      %253 = vsyncadd [#allocation4], %s252
      %s255 = sshll.u32 [#allocation10], 4
      %s256 = int_to_ptr.vmem [resolvable:$true] %s255
      %258 = dma.vmem_to_hbm [thread:$0]  %s256, 128, %s4, [#allocation4]
    $region37: #{layer_norm.1} parent=1 // pred_fallthru
      _
    // Predicated region
    $region38: #{layer_norm.1} parent=1 // pred_check
      _
    $region39: #{layer_norm.1} parent=1 // pred_check_branch
      %260 = sbr.rel (0) target = $region41
    $region40: #{layer_norm.1} parent=1 // pred_region
      %261 = dma.done [#allocation4], 128
    $region41: #{layer_norm.1} parent=1 // pred_fallthru
      _
    %262 = vsyncpa [#allocation3], 1
    %263 = vsyncpa [#allocation6], 1
    %264 = vsyncpa [#allocation9], 1
    %265 = vsyncpa [#allocation4], 1

</llo_original>
